<compile_context>
chip_gen: v5e
topology: v5e:2x2
jax: 0.10.0
libtpu: 0.0.40
codegen_flags: <defaults>
</compile_context>

<pallas_src>
import functools

import jax
import jax.numpy as jnp
from jax.experimental import pallas as pl
from jax.experimental.pallas import tpu as pltpu


def _simple_weight_kernel(w_ref, o_ref, *, do_sigmoid: bool, do_softmax: bool):
    x = w_ref[...].astype(jnp.float32)
    if do_sigmoid:
        # sigmoid(x) == 0.5 * (tanh(0.5*x) + 1): single EUP transcendental,
        # numerically stable for all finite x.
        x = 0.5 * (jnp.tanh(0.5 * x) + 1.0)
    if do_softmax:
        if not do_sigmoid:
            # Stable softmax needs the row-max shift only when the input is
            # unbounded. After sigmoid, x is in (0,1) so exp(x) <= e and the
            # XLU cross-lane max + broadcast-subtract can be skipped.
            x = x - jnp.max(x, axis=-1, keepdims=True)
        e = jnp.exp(x)
        denom = jnp.sum(e, axis=-1, keepdims=True)
        # EUP approximate reciprocal + one Newton step on the (rows, 1)
        # denominator: ~exact f32 normalization at negligible cost.
        r = pl.reciprocal(denom, approx=True)
        r = r * (2.0 - denom * r)
        x = e * r
    o_ref[...] = x.astype(o_ref.dtype)


# Fast path (single un-pipelined VMEM block) is only used when input + output
# together fit in ~1 MiB: below that, per-step pipelining overhead dominates;
# above it, the pipelined path is ~2x faster and avoids scoped-VMEM pressure.
_FAST_PATH_TOTAL_BYTES = 1 << 20  # 1 MiB (input + output)

_MIB = 1024 * 1024


def _vmem_capacity_bytes() -> int:
    try:
        return int(pltpu.get_tpu_info().vmem_capacity_bytes)
    except Exception:
        # Conservative default (v7x-sized VMEM) if the query is unavailable.
        return 64 * _MIB


def _row_align(dtype) -> int:
    # Sub-32-bit dtypes pack 2-4 rows per sublane; keep tiles fully packed.
    itemsize = jnp.dtype(dtype).itemsize
    if itemsize >= 4:
        return 8
    if itemsize == 2:
        return 16
    return 32


def _round_up(x: int, m: int) -> int:
    return -(-x // m) * m


def simple_weight_layer(w, *, do_sigmoid=False, do_softmax=False):
    """Pallas equivalent of SimpleWeightLayer.forward().

    w: jnp array of shape (N,) or (R, C). Returns (1, N) or (R, C), matching
    the PyTorch module's output.
    """
    if w.ndim == 1:
        w = w[None, :]
    assert w.ndim == 2, "SimpleWeightLayer weight must be 1-D or 2-D"
    R, C = w.shape

    # Identity path: forward() just returns the (unsqueezed) parameter.
    # No kernel launch, no DMA round trip. (For genuinely tiny activated
    # weights a caller that wants XLA fusion into the consumer can use plain
    # jnp ops instead; the kernel path is kept here so this module is
    # self-contained and exercisable.)
    if not do_sigmoid and not do_softmax:
        return w

    itemsize = jnp.dtype(w.dtype).itemsize
    n_elems = R * C
    n_bytes = n_elems * itemsize

    kernel = functools.partial(
        _simple_weight_kernel, do_sigmoid=do_sigmoid, do_softmax=do_softmax
    )

    flops = (3 * n_elems if do_sigmoid else 0) + (4 * n_elems if do_softmax else 0)
    transcendentals = (n_elems if do_sigmoid else 0) + (n_elems if do_softmax else 0)
    cost = pl.CostEstimate(
        flops=flops, transcendentals=transcendentals, bytes_accessed=2 * n_bytes
    )
    out_shape = jax.ShapeDtypeStruct((R, C), w.dtype)

    # --- Small-weight fast path: one un-pipelined VMEM block, no grid. ---
    if 2 * n_bytes <= _FAST_PATH_TOTAL_BYTES:
        return pl.pallas_call(
            kernel,
            out_shape=out_shape,
            in_specs=[pl.BlockSpec(memory_space=pltpu.MemorySpace.VMEM)],
            out_specs=pl.BlockSpec(memory_space=pltpu.MemorySpace.VMEM),
            cost_estimate=cost,
        )(w)

    # --- Large-weight path: row-tiled, pipelined. Softmax is row-local, so
    # keep the full C per block (one-pass lane-axis reduction) and tile only
    # the row axis. ---
    # TODO(synk): a huge (1, N) weight only fills 1 of 8 sublanes per vreg;
    # folding it into sublanes needs a two-pass max/sum-combine softmax.
    vmem_cap = _vmem_capacity_bytes()
    # Per-operand tile budget: larger tiles on 128-MiB parts (v5e/v6e),
    # conservative on 64-MiB parts (v7x).
    tile_budget = 16 * _MIB if vmem_cap >= 100 * _MIB else 8 * _MIB

    align = _row_align(w.dtype)
    bytes_per_row = max(1, C * itemsize)
    max_rows = max(align, tile_budget // bytes_per_row)
    tr = max(align, (min(512, max_rows) // align) * align)
    # Ensure at least 2 grid steps when R allows it, so the "parallel" grid
    # axis can be sharded across v7x's 2 TensorCores.
    if R > align:
        tr = min(tr, max(align, _round_up(pl.cdiv(R, 2), align)))
    tr = min(tr, _round_up(R, align))

    grid_steps = pl.cdiv(R, tr)
    tile_bytes = tr * C * itemsize
    # Input (up to triple-buffered) + output (double-buffered) ≈ 5 tiles
    # resident; request headroom but stay well inside physical VMEM.
    vmem_limit = int(min((vmem_cap * 3) // 4, max(32 * _MIB, 6 * tile_bytes)))

    if grid_steps >= 3:
        in_spec = pl.BlockSpec(
            (tr, C), lambda i: (i, 0), pipeline_mode=pl.Buffered(3)
        )
    else:
        in_spec = pl.BlockSpec((tr, C), lambda i: (i, 0))

    return pl.pallas_call(
        kernel,
        out_shape=out_shape,
        grid=(grid_steps,),
        in_specs=[in_spec],
        out_specs=pl.BlockSpec((tr, C), lambda i: (i, 0)),
        compiler_params=pltpu.CompilerParams(
            dimension_semantics=("parallel",),
            vmem_limit_bytes=vmem_limit,
        ),
        cost_estimate=cost,
    )(w)


def _reference(w, *, do_sigmoid=False, do_softmax=False):
    if w.ndim == 1:
        w = w[None, :]
    x = w.astype(jnp.float32)
    if do_sigmoid:
        x = jax.nn.sigmoid(x)
    if do_softmax:
        x = jax.nn.softmax(x, axis=1)
    return x.astype(w.dtype)


if __name__ == "__main__":
    key = jax.random.PRNGKey(0)
    k1, k2, k3 = jax.random.split(key, 3)

    # Deterministic "parameter" initialization (synthetic, no checkpoint).
    w_2d = jax.random.normal(k1, (2, 32), dtype=jnp.float32)      # typical tiny weight
    w_1d = jax.random.normal(k2, (32,), dtype=jnp.float32)        # 1-D weight -> (1, 32)
    w_big = jax.random.normal(k3, (2048, 512), dtype=jnp.float32) # exercises tiled path

    # Case 1: sigmoid + softmax on a 2-D weight (fast path).
    out_a = jax.block_until_ready(
        simple_weight_layer(w_2d, do_sigmoid=True, do_softmax=True))
    ref_a = _reference(w_2d, do_sigmoid=True, do_softmax=True)

    # Case 2: plain passthrough on a 1-D weight (short-circuited, no kernel).
    out_b = jax.block_until_ready(
        simple_weight_layer(w_1d, do_sigmoid=False, do_softmax=False))
    ref_b = _reference(w_1d, do_sigmoid=False, do_softmax=False)

    # Case 3: sigmoid only (fast path).
    out_c = jax.block_until_ready(
        simple_weight_layer(w_2d, do_sigmoid=True, do_softmax=False))
    ref_c = _reference(w_2d, do_sigmoid=True, do_softmax=False)

    # Case 4: softmax only (fast path, stable-softmax branch).
    out_d = jax.block_until_ready(
        simple_weight_layer(w_2d, do_sigmoid=False, do_softmax=True))
    ref_d = _reference(w_2d, do_sigmoid=False, do_softmax=True)

    # Case 5: sigmoid + softmax on a large weight (row-tiled pipelined path).
    out_e = jax.block_until_ready(
        simple_weight_layer(w_big, do_sigmoid=True, do_softmax=True))
    ref_e = _reference(w_big, do_sigmoid=True, do_softmax=True)

    assert out_a.shape == (2, 32) and out_b.shape == (1, 32)
    assert out_c.shape == (2, 32) and out_d.shape == (2, 32)
    assert out_e.shape == (2048, 512)
    assert jnp.allclose(out_a, ref_a, atol=1e-5, rtol=1e-5)
    assert jnp.allclose(out_b, ref_b)                      # exact passthrough
    assert jnp.allclose(out_c, ref_c, atol=1e-5, rtol=1e-5)
    assert jnp.allclose(out_d, ref_d, atol=1e-5, rtol=1e-5)
    assert jnp.allclose(out_e, ref_e, atol=1e-5, rtol=1e-5)

    print("KERNEL_OK")
</pallas_src>

<mosaic_0001>
module attributes {stable_mosaic.version = 11 : i64} {
  func.func @_simple_weight_kernel(%arg0: memref<2x32xf32, #tpu.memory_space<vmem>>, %arg1: memref<2x32xf32, #tpu.memory_space<vmem>>) attributes {dimension_semantics = [], scalar_prefetch = 0 : i64, scratch_operands = 0 : i64, tpu.core_type = #tpu.core_type<tc>} {
    %c0 = arith.constant 0 : index
    %c0_0 = arith.constant 0 : index
    %0 = vector.load %arg0[%c0, %c0_0] : memref<2x32xf32, #tpu.memory_space<vmem>>, vector<2x32xf32>
    %cst = arith.constant 5.000000e-01 : f32
    %1 = vector.broadcast %cst : f32 to vector<2x32xf32>
    %2 = arith.mulf %1, %0 : vector<2x32xf32>
    %3 = math.tanh %2 : vector<2x32xf32>
    %cst_1 = arith.constant 1.000000e+00 : f32
    %4 = vector.broadcast %cst_1 : f32 to vector<2x32xf32>
    %5 = arith.addf %3, %4 : vector<2x32xf32>
    %cst_2 = arith.constant 5.000000e-01 : f32
    %6 = vector.broadcast %cst_2 : f32 to vector<2x32xf32>
    %7 = arith.mulf %6, %5 : vector<2x32xf32>
    %8 = math.exp %7 : vector<2x32xf32>
    %cst_3 = arith.constant dense<0.000000e+00> : vector<2xf32>
    %9 = vector.multi_reduction <add>, %8, %cst_3 [1] : vector<2x32xf32> to vector<2xf32>
    %10 = vector.shape_cast %9 : vector<2xf32> to vector<2x1xf32>
    %11 = tpu.reciprocal %10 {approx = true} : vector<2x1xf32> -> vector<2x1xf32>
    %12 = arith.mulf %10, %11 : vector<2x1xf32>
    %cst_4 = arith.constant 2.000000e+00 : f32
    %13 = vector.broadcast %cst_4 : f32 to vector<2x1xf32>
    %14 = arith.subf %13, %12 : vector<2x1xf32>
    %15 = arith.mulf %11, %14 : vector<2x1xf32>
    %16 = vector.broadcast %15 : vector<2x1xf32> to vector<2x32xf32>
    %17 = arith.mulf %8, %16 : vector<2x32xf32>
    %c0_5 = arith.constant 0 : index
    %c0_6 = arith.constant 0 : index
    %18 = vector.load %arg1[%c0_5, %c0_6] : memref<2x32xf32, #tpu.memory_space<vmem>>, vector<2x32xf32>
    tpu.vector_store %arg1[%c0_5, %c0_6], %17 {strides = array<i32>} : memref<2x32xf32, #tpu.memory_space<vmem>>, vector<2x32xf32>,
    return
  }
}

</mosaic_0001>

<llo_original>
// kernel: tpu_custom_call.1
$region0: #{tpu_custom_call.1}
  #allocation0 [shape = 'u32[]', space=smem, size = 0x4, offset = 0x4, fixed_abs, tag = 'smem constant byte address 0x4 - core index']
  #allocation1 [shape = 'u32[72,128]{1,0:T(1,128)}', space=vmem, size = 0x9000, scoped, tag = 'internal scratch']
  %s0 = inlined_call_operand.hbm [shape: f32[2,32], index: 0, kind: input, shape index: {}]
  %s1 = inlined_call_operand.hbm [shape: f32[2,32], index: 1, kind: output, shape index: {}]
  %s2 = sld [smem:[#allocation0]]
  $region18: #{tpu_custom_call.1} parent=0
    _
  %s4 = ssub.s32 1, %s2
  %s5 = scalar_select 0, %s4, %s2
  $region1: #{tpu_custom_call.1} parent=0
    #allocation2 [shape = 'u8[1024]{0}', space=vmem, size = 0x400, scoped, tag = 'input window, operand 0, single buffered']
    #allocation3 [shape = 's32[1]{0}', space=sflag, size = 0x4, scoped, tag = 'scoped memory for tpu_custom_call.1']
    #allocation4 [shape = 's32[1]{0}', space=sflag, size = 0x4, scoped, tag = 'scoped memory for tpu_custom_call.1']
    #allocation5 [shape = 'u8[1024]{0}', space=vmem, size = 0x400, scoped, tag = 'output window, operand 0, single buffered']
    %6 = vsyncpa [#allocation3], 0
    %7 = vsyncpa [#allocation4], 0
    // Predicated region
    $region2: #{tpu_custom_call.1} parent=1 // pred_check
      _
    $region3: #{tpu_custom_call.1} parent=1 // pred_check_branch
      %9 = sbr.rel (0) target = $region5
    $region4: #{tpu_custom_call.1} parent=1 // pred_region
      %11 = vsyncadd [#allocation3], 0
      %s13 = sshll.u32 %s0, 4
      %s14 = int_to_ptr.hbm [resolvable:$true] %s13
      %s15 = sshll.u32 [#allocation2], 4
      %s16 = int_to_ptr.vmem [resolvable:$true] %s15
      %18 = dma.hbm_to_vmem [thread:$0]  %s14, 32, %s16, [#allocation3]
    $region5: #{tpu_custom_call.1} parent=1 // pred_fallthru
      _
    // Predicated region
    $region6: #{tpu_custom_call.1} parent=1 // pred_check
      _
    $region7: #{tpu_custom_call.1} parent=1 // pred_check_branch
      %20 = sbr.rel (0) target = $region9
    $region8: #{tpu_custom_call.1} parent=1 // pred_region
      %22 = dma.done [#allocation3], 32
    $region9: #{tpu_custom_call.1} parent=1 // pred_fallthru
      _
    %v23 = vld [vmem:[#allocation2] sm:$0x3]
    %v24 = vmul.f32 %v23, 0.5
    %v25 = vtanh.pop %v24
    %v26 = vadd.f32 %v25, 1.0
    %v27 = vmul.f32 %v26, 0.5
    %v28 = vmul.f32 %v27, 1.442695
    %v29 = vpow.pop %v28
    %vm30 = vcmask 254976
    %v31 = vsel %vm30, %v29, 0.0
    %32 = vadd.xlane.f32.xlu0 %v31
    %v33 = vpop.xlane.xlu0 %32
    %v34 = vrcp.pop %v33
    %v35 = vmul.f32 %v33, %v34
    %v36 = vsub.f32 2.0, %v35
    %v37 = vmul.f32 %v34, %v36
    %v38 = vmul.f32 %v29, %v37
    %39 = vst.msk [vmem:[#allocation5] sm:$0x3] %vm30, %v38
    // Predicated region
    $region10: #{tpu_custom_call.1} parent=1 // pred_check
      _
    $region11: #{tpu_custom_call.1} parent=1 // pred_check_branch
      %41 = sbr.rel (0) target = $region13
    $region12: #{tpu_custom_call.1} parent=1 // pred_region
      %43 = vsyncadd [#allocation4], 0
      %s45 = sshll.u32 [#allocation5], 4
      %s46 = int_to_ptr.vmem [resolvable:$true] %s45
      %s47 = sshll.u32 %s1, 4
      %s48 = int_to_ptr.hbm [resolvable:$true] %s47
      %50 = dma.vmem_to_hbm [thread:$0]  %s46, 32, %s48, [#allocation4]
    $region13: #{tpu_custom_call.1} parent=1 // pred_fallthru
      _
    // Predicated region
    $region14: #{tpu_custom_call.1} parent=1 // pred_check
      _
    $region15: #{tpu_custom_call.1} parent=1 // pred_check_branch
      %52 = sbr.rel (0) target = $region17
    $region16: #{tpu_custom_call.1} parent=1 // pred_region
      %54 = dma.done [#allocation4], 32
    $region17: #{tpu_custom_call.1} parent=1 // pred_fallthru
      _
    %55 = vsyncpa [#allocation3], 1
    %56 = vsyncpa [#allocation4], 1

</llo_original>
